<compile_context>
chip_gen: v7x
topology: tpu7x:2x2x1
jax: 0.10.0
libtpu: 0.0.40
codegen_flags: <defaults>
</compile_context>

<pallas_src>
import functools

import jax
import jax.numpy as jnp
import numpy as np
from jax import lax
from jax.experimental import pallas as pl
from jax.experimental.pallas import tpu as pltpu

EPS = 0.0001
LANE = 512            # lane-dense last dim (multiple of 128)
MAX_TILE_R = 512      # rows per grid step -> (512, 512) f32 block = 1 MiB per input
ALIGN = 8 * LANE      # smallest count that reshapes to an (8, LANE)-aligned 2-D view


# ----------------------------- Pallas kernel -------------------------------

def _masked_l1_kernel(a_ref, b_ref, m_ref, num_ref, den_ref, *,
                      tile_r, rows, steps_per_core, need_mask):
    c = pl.program_id(0)          # core / parallel axis
    i = pl.program_id(1)          # sequential reduction axis

    @pl.when(i == 0)
    def _init():
        num_ref[...] = jnp.zeros_like(num_ref)
        den_ref[...] = jnp.zeros_like(den_ref)

    a = a_ref[...]
    b = b_ref[...]
    m = m_ref[...]

    # _calc_logic_weights: w = (1 - |t - round(t)|)^2.  jnp.round kept on purpose:
    # half-to-even matches torch.round (do NOT swap for floor(x + 0.5)).
    w = 1.0 - jnp.abs(b - jnp.round(b))
    # |a*m*w - b*m*w| == m*w*|a-b|  for m, w >= 0.
    contrib = (m * (w * w)) * jnp.abs(a - b)

    if need_mask:
        # Ragged last tile / surplus grid step: rows at or beyond `rows` hold
        # unspecified (possibly non-finite) data -> select them to exactly 0.
        gstep = c * steps_per_core + i
        rows_left = rows - gstep * tile_r
        valid = lax.broadcasted_iota(jnp.int32, (tile_r, 1), 0) < rows_left
        contrib = jnp.where(valid, contrib, 0.0)
        m = jnp.where(valid, m, 0.0)

    # Fold the (tile_r, LANE) tile down to (8, LANE) with pure VALU adds so the
    # resident accumulator RMW is only 4 vregs per input (no per-step 256-vreg RMW,
    # no big finalize XLU reduce).
    num_ref[...] += contrib.reshape(tile_r // 8, 8, LANE).sum(axis=0)[None]
    den_ref[...] += m.reshape(tile_r // 8, 8, LANE).sum(axis=0)[None]


def _masked_weighted_l1_sums(a, b, m):
    """Returns (sum(m * w(b) * |a - b|), sum(m)) over all elements via Pallas."""
    T = a.size
    a = a.astype(jnp.float32).reshape(-1)
    b = b.astype(jnp.float32).reshape(-1)
    m = m.astype(jnp.float32).reshape(-1)
    if T % ALIGN != 0:
        # Unaligned fallback: minimal flat pad (< ALIGN elements).  Zero padding is
        # inert (mask = 0, |a-b| = 0).  Aligned shapes take the zero-copy path below.
        pad = ALIGN - T % ALIGN
        a = jnp.pad(a, (0, pad))
        b = jnp.pad(b, (0, pad))
        m = jnp.pad(m, (0, pad))
    a2 = a.reshape(-1, LANE)
    b2 = b.reshape(-1, LANE)
    m2 = m.reshape(-1, LANE)

    rows = a2.shape[0]                        # static, multiple of 8
    tile_r = min(MAX_TILE_R, rows)            # multiple of 8 by construction
    grid_rows = pl.cdiv(rows, tile_r)
    ncores = 2 if grid_rows >= 2 else 1       # split across v7x TCs; harmless on 1-TC chips
    spc = pl.cdiv(grid_rows, ncores)          # sequential steps per core
    need_mask = (ncores * spc * tile_r) != rows
    clamp = ncores * spc > grid_rows          # surplus steps re-read the last block

    def row_map(c, i):
        s = c * spc + i
        if clamp:
            s = jnp.minimum(s, grid_rows - 1)
        return (s, 0)

    in_spec = pl.BlockSpec((tile_r, LANE), row_map)
    out_spec = pl.BlockSpec((1, 8, LANE), lambda c, i: (c, 0, 0))

    kernel = functools.partial(_masked_l1_kernel, tile_r=tile_r, rows=rows,
                               steps_per_core=spc, need_mask=need_mask)

    num_p, den_p = pl.pallas_call(
        kernel,
        out_shape=(jax.ShapeDtypeStruct((ncores, 8, LANE), jnp.float32),
                   jax.ShapeDtypeStruct((ncores, 8, LANE), jnp.float32)),
        grid_spec=pltpu.PrefetchScalarGridSpec(
            num_scalar_prefetch=0,
            grid=(ncores, spc),
            in_specs=[in_spec, in_spec, in_spec],
            out_specs=[out_spec, out_spec]),
        compiler_params=pltpu.CompilerParams(
            dimension_semantics=("parallel", "arbitrary")),
    )(a2, b2, m2)

    # Tiny (ncores*8*LANE) finalize reduce in XLA.
    return jnp.sum(num_p), jnp.sum(den_p)


# ------------------------------ JAX glue -----------------------------------

def _transpose_and_gather_feat(feat, ind):
    """feat: (B, C, H, W) NCHW; ind: (B, K) flat H*W indices -> (B, K, C)."""
    B, C, H, W = feat.shape
    f = jnp.transpose(feat, (0, 2, 3, 1)).reshape(B, H * W, C)
    return jnp.take_along_axis(f, ind[..., None].astype(jnp.int32), axis=1)


def _calc_span_weights(o1, o2, t):
    delta = jnp.minimum((jnp.abs(o1 - t) + jnp.abs(o2 - t)) * 5.0, 1.0)
    return jnp.sin(1.570796 * delta)


@jax.jit
def logic_coord_loss(coord, span, lc_ind, lc_span, coord_gt, coord_mask,
                     ct_ind, ct_mask):
    B, N = lc_span.shape[0], lc_span.shape[1]

    # ---- dense logical-coordinate loss: the only HBM-heavy part -> Pallas ----
    num, den = _masked_weighted_l1_sums(coord, coord_gt, coord_mask)
    coord_loss = num / (den + EPS)

    # ---- O(B*N) span losses: gathers + epilogue stay in plain JAX (per review) ----
    # TODO(synk): the data-dependent gather could become a scalar-prefetch DMA kernel,
    # but at (B, N, 4) scale it is not worth a pallas_call.
    coords_pred = _transpose_and_gather_feat(
        coord, lc_ind.reshape(B, N * 4)).reshape(B, N, 4, 2)
    cols_pred = coords_pred[..., 0]              # (B, N, 4)
    rows_pred = coords_pred[..., 1]              # (B, N, 4)
    span_pred = _transpose_and_gather_feat(span, ct_ind)   # (B, N, 2)

    span_mask = jnp.broadcast_to(ct_mask.astype(jnp.float32)[..., None], (B, N, 2))
    num_span = span_mask.sum() + EPS

    csd = cols_pred[:, :, jnp.array([1, 2])] - cols_pred[:, :, jnp.array([0, 3])]
    rsd = rows_pred[:, :, jnp.array([3, 2])] - rows_pred[:, :, jnp.array([0, 1])]
    csp = jnp.broadcast_to(span_pred[..., 0:1], (B, N, 2))
    rsp = jnp.broadcast_to(span_pred[..., 1:2], (B, N, 2))
    cg = jnp.broadcast_to(lc_span[..., 0:1], (B, N, 2))
    rg = jnp.broadcast_to(lc_span[..., 1:2], (B, N, 2))
    cw = _calc_span_weights(csp, csd, cg)
    rw = _calc_span_weights(rsp, rsd, rg)
    sw = jnp.stack([(cw[..., 0] + cw[..., 1]) * 0.5,
                    (rw[..., 0] + rw[..., 1]) * 0.5], axis=-1)

    col_diff = jnp.sum(jnp.abs(csd * span_mask * cw - cg * span_mask * cw)) / num_span
    row_diff = jnp.sum(jnp.abs(rsd * span_mask * rw - rg * span_mask * rw)) / num_span
    span_diff_loss = col_diff + row_diff
    span_loss = jnp.sum(jnp.abs(span_pred * span_mask * sw -
                                lc_span * span_mask * sw)) / num_span
    return coord_loss, span_diff_loss, span_loss


# --------------------------- pure-JAX reference -----------------------------

@jax.jit
def reference_loss(coord, span, lc_ind, lc_span, coord_gt, coord_mask,
                   ct_ind, ct_mask):
    B, N = lc_span.shape[0], lc_span.shape[1]
    coords_pred = _transpose_and_gather_feat(
        coord, lc_ind.reshape(B, N * 4)).reshape(B, N, 4, 2)
    cols = coords_pred[..., 0]
    rows = coords_pred[..., 1]
    span_pred = _transpose_and_gather_feat(span, ct_ind)
    span_mask = jnp.broadcast_to(ct_mask.astype(jnp.float32)[..., None], (B, N, 2))
    num = span_mask.sum() + EPS

    cwgt = (1.0 - jnp.abs(coord_gt - jnp.round(coord_gt))) ** 2
    coord_loss = jnp.sum(jnp.abs(coord * coord_mask * cwgt -
                                 coord_gt * coord_mask * cwgt)) / (coord_mask.sum() + EPS)

    csd = cols[:, :, jnp.array([1, 2])] - cols[:, :, jnp.array([0, 3])]
    rsd = rows[:, :, jnp.array([3, 2])] - rows[:, :, jnp.array([0, 1])]
    csp = jnp.broadcast_to(span_pred[..., 0:1], (B, N, 2))
    rsp = jnp.broadcast_to(span_pred[..., 1:2], (B, N, 2))
    cg = jnp.broadcast_to(lc_span[..., 0:1], (B, N, 2))
    rg = jnp.broadcast_to(lc_span[..., 1:2], (B, N, 2))
    cwt = _calc_span_weights(csp, csd, cg)
    rwt = _calc_span_weights(rsp, rsd, rg)
    sw = jnp.stack([(cwt[..., 0] + cwt[..., 1]) / 2.0,
                    (rwt[..., 0] + rwt[..., 1]) / 2.0], axis=-1)
    cdl = jnp.sum(jnp.abs(csd * span_mask * cwt - cg * span_mask * cwt)) / num
    rdl = jnp.sum(jnp.abs(rsd * span_mask * rwt - rg * span_mask * rwt)) / num
    sl = jnp.sum(jnp.abs(span_pred * span_mask * sw - lc_span * span_mask * sw)) / num
    return coord_loss, cdl + rdl, sl


# --------------------------------- main -------------------------------------

if __name__ == "__main__":
    # (B, H, W, N); C is fixed at 2 (x/y logical-coordinate channels)
    configs = [
        (2, 16, 16, 8),     # tiny + unaligned -> minimal-pad path, single grid step
        (2, 512, 320, 16),  # (8*LANE)-aligned -> zero-copy path, 2-core grid, ragged tile
    ]
    key = jax.random.PRNGKey(0)
    for (B, H, W, N) in configs:
        key, *ks = jax.random.split(key, 9)
        coord = jax.random.normal(ks[0], (B, 2, H, W), jnp.float32) * 2.0
        span = jax.random.uniform(ks[1], (B, 2, H, W), jnp.float32) * 3.0
        lc_ind = jax.random.randint(ks[2], (B, N, 4), 0, H * W, dtype=jnp.int32)
        lc_span = jax.random.uniform(ks[3], (B, N, 2), jnp.float32) * 3.0
        coord_gt = jax.random.uniform(ks[4], (B, 2, H, W), jnp.float32) * 4.0
        coord_mask = (jax.random.uniform(ks[5], (B, 2, H, W)) > 0.5).astype(jnp.float32)
        ct_ind = jax.random.randint(ks[6], (B, N), 0, H * W, dtype=jnp.int32)
        ct_mask = (jax.random.uniform(ks[7], (B, N)) > 0.3).astype(jnp.float32)

        out = jax.block_until_ready(
            logic_coord_loss(coord, span, lc_ind, lc_span, coord_gt, coord_mask,
                             ct_ind, ct_mask))
        ref = jax.block_until_ready(
            reference_loss(coord, span, lc_ind, lc_span, coord_gt, coord_mask,
                           ct_ind, ct_mask))
        np.testing.assert_allclose(np.array(out), np.array(ref), rtol=2e-3, atol=1e-5)

    print("KERNEL_OK")
</pallas_src>

<mosaic_0001>
module attributes {stable_mosaic.version = 11 : i64} {
  func.func @_masked_l1_kernel(%arg0: i32, %arg1: i32, %arg2: memref<8x512xf32, #tpu.memory_space<vmem>>, %arg3: memref<8x512xf32, #tpu.memory_space<vmem>>, %arg4: memref<8x512xf32, #tpu.memory_space<vmem>>, %arg5: memref<1x8x512xf32, #tpu.memory_space<vmem>>, %arg6: memref<1x8x512xf32, #tpu.memory_space<vmem>>) attributes {dimension_semantics = [#tpu.dimension_semantics<parallel>, #tpu.dimension_semantics<arbitrary>], iteration_bounds = array<i64: 1, 1>, scalar_prefetch = 0 : i64, scratch_operands = 0 : i64, tpu.core_type = #tpu.core_type<tc>, window_params = [{transform_indices = @transform_0, window_bounds = array<i64: 8, 512>}, {transform_indices = @transform_1, window_bounds = array<i64: 8, 512>}, {transform_indices = @transform_2, window_bounds = array<i64: 8, 512>}, {transform_indices = @transform_3, window_bounds = array<i64: 1, 8, 512>}, {transform_indices = @transform_4, window_bounds = array<i64: 1, 8, 512>}]} {
    %c0_i32 = arith.constant 0 : i32
    %0 = arith.cmpi eq, %arg1, %c0_i32 : i32
    %1 = arith.extui %0 : i1 to i32
    %c0_i32_0 = arith.constant 0 : i32
    %2 = arith.cmpi ne, %1, %c0_i32_0 : i32
    scf.if %2 {
      %cst_20 = arith.constant 0.000000e+00 : f32
      %28 = vector.broadcast %cst_20 : f32 to vector<1x8x512xf32>
      %c0_21 = arith.constant 0 : index
      %c0_22 = arith.constant 0 : index
      %c0_23 = arith.constant 0 : index
      %29 = vector.load %arg5[%c0_21, %c0_22, %c0_23] : memref<1x8x512xf32, #tpu.memory_space<vmem>>, vector<1x8x512xf32>
      tpu.vector_store %arg5[%c0_21, %c0_22, %c0_23], %28 {strides = array<i32>} : memref<1x8x512xf32, #tpu.memory_space<vmem>>, vector<1x8x512xf32>,
      %cst_24 = arith.constant 0.000000e+00 : f32
      %30 = vector.broadcast %cst_24 : f32 to vector<1x8x512xf32>
      %c0_25 = arith.constant 0 : index
      %c0_26 = arith.constant 0 : index
      %c0_27 = arith.constant 0 : index
      %31 = vector.load %arg6[%c0_25, %c0_26, %c0_27] : memref<1x8x512xf32, #tpu.memory_space<vmem>>, vector<1x8x512xf32>
      tpu.vector_store %arg6[%c0_25, %c0_26, %c0_27], %30 {strides = array<i32>} : memref<1x8x512xf32, #tpu.memory_space<vmem>>, vector<1x8x512xf32>,
    } else {
    }
    %c0 = arith.constant 0 : index
    %c0_1 = arith.constant 0 : index
    %3 = vector.load %arg2[%c0, %c0_1] : memref<8x512xf32, #tpu.memory_space<vmem>>, vector<8x512xf32>
    %c0_2 = arith.constant 0 : index
    %c0_3 = arith.constant 0 : index
    %4 = vector.load %arg3[%c0_2, %c0_3] : memref<8x512xf32, #tpu.memory_space<vmem>>, vector<8x512xf32>
    %c0_4 = arith.constant 0 : index
    %c0_5 = arith.constant 0 : index
    %5 = vector.load %arg4[%c0_4, %c0_5] : memref<8x512xf32, #tpu.memory_space<vmem>>, vector<8x512xf32>
    %6 = math.roundeven %4 : vector<8x512xf32>
    %7 = arith.subf %4, %6 : vector<8x512xf32>
    %8 = math.absf %7 : vector<8x512xf32>
    %cst = arith.constant 1.000000e+00 : f32
    %9 = vector.broadcast %cst : f32 to vector<8x512xf32>
    %10 = arith.subf %9, %8 : vector<8x512xf32>
    %11 = arith.mulf %10, %10 : vector<8x512xf32>
    %12 = arith.mulf %5, %11 : vector<8x512xf32>
    %13 = arith.subf %3, %4 : vector<8x512xf32>
    %14 = math.absf %13 : vector<8x512xf32>
    %15 = arith.mulf %12, %14 : vector<8x512xf32>
    %c0_6 = arith.constant 0 : index
    %c0_7 = arith.constant 0 : index
    %c0_8 = arith.constant 0 : index
    %16 = vector.load %arg5[%c0_6, %c0_7, %c0_8] : memref<1x8x512xf32, #tpu.memory_space<vmem>>, vector<1x8x512xf32>
    %17 = vector.shape_cast %15 : vector<8x512xf32> to vector<1x8x512xf32>
    %cst_9 = arith.constant dense<0.000000e+00> : vector<8x512xf32>
    %18 = vector.multi_reduction <add>, %17, %cst_9 [0] : vector<1x8x512xf32> to vector<8x512xf32>
    %19 = vector.shape_cast %18 : vector<8x512xf32> to vector<1x8x512xf32>
    %20 = arith.addf %16, %19 : vector<1x8x512xf32>
    %c0_10 = arith.constant 0 : index
    %c0_11 = arith.constant 0 : index
    %c0_12 = arith.constant 0 : index
    %21 = vector.load %arg5[%c0_10, %c0_11, %c0_12] : memref<1x8x512xf32, #tpu.memory_space<vmem>>, vector<1x8x512xf32>
    tpu.vector_store %arg5[%c0_10, %c0_11, %c0_12], %20 {strides = array<i32>} : memref<1x8x512xf32, #tpu.memory_space<vmem>>, vector<1x8x512xf32>,
    %c0_13 = arith.constant 0 : index
    %c0_14 = arith.constant 0 : index
    %c0_15 = arith.constant 0 : index
    %22 = vector.load %arg6[%c0_13, %c0_14, %c0_15] : memref<1x8x512xf32, #tpu.memory_space<vmem>>, vector<1x8x512xf32>
    %23 = vector.shape_cast %5 : vector<8x512xf32> to vector<1x8x512xf32>
    %cst_16 = arith.constant dense<0.000000e+00> : vector<8x512xf32>
    %24 = vector.multi_reduction <add>, %23, %cst_16 [0] : vector<1x8x512xf32> to vector<8x512xf32>
    %25 = vector.shape_cast %24 : vector<8x512xf32> to vector<1x8x512xf32>
    %26 = arith.addf %22, %25 : vector<1x8x512xf32>
    %c0_17 = arith.constant 0 : index
    %c0_18 = arith.constant 0 : index
    %c0_19 = arith.constant 0 : index
    %27 = vector.load %arg6[%c0_17, %c0_18, %c0_19] : memref<1x8x512xf32, #tpu.memory_space<vmem>>, vector<1x8x512xf32>
    tpu.vector_store %arg6[%c0_17, %c0_18, %c0_19], %26 {strides = array<i32>} : memref<1x8x512xf32, #tpu.memory_space<vmem>>, vector<1x8x512xf32>,
    return
  }
  func.func @transform_0(%arg0: i32, %arg1: i32) -> (i32, i32) {
    %c1_i32 = arith.constant 1 : i32
    %0 = arith.muli %arg0, %c1_i32 : i32
    %1 = arith.addi %0, %arg1 : i32
    %c0_i32 = arith.constant 0 : i32
    %c0_i32_0 = arith.constant 0 : i32
    return %1, %c0_i32 : i32, i32
  }
  func.func @transform_1(%arg0: i32, %arg1: i32) -> (i32, i32) {
    %c1_i32 = arith.constant 1 : i32
    %0 = arith.muli %arg0, %c1_i32 : i32
    %1 = arith.addi %0, %arg1 : i32
    %c0_i32 = arith.constant 0 : i32
    %c0_i32_0 = arith.constant 0 : i32
    return %1, %c0_i32 : i32, i32
  }
  func.func @transform_2(%arg0: i32, %arg1: i32) -> (i32, i32) {
    %c1_i32 = arith.constant 1 : i32
    %0 = arith.muli %arg0, %c1_i32 : i32
    %1 = arith.addi %0, %arg1 : i32
    %c0_i32 = arith.constant 0 : i32
    %c0_i32_0 = arith.constant 0 : i32
    return %1, %c0_i32 : i32, i32
  }
  func.func @transform_3(%arg0: i32, %arg1: i32) -> (i32, i32, i32) {
    %c0_i32 = arith.constant 0 : i32
    %c0_i32_0 = arith.constant 0 : i32
    %c0_i32_1 = arith.constant 0 : i32
    return %arg0, %c0_i32, %c0_i32_0 : i32, i32, i32
  }
  func.func @transform_4(%arg0: i32, %arg1: i32) -> (i32, i32, i32) {
    %c0_i32 = arith.constant 0 : i32
    %c0_i32_0 = arith.constant 0 : i32
    %c0_i32_1 = arith.constant 0 : i32
    return %arg0, %c0_i32, %c0_i32_0 : i32, i32, i32
  }
}

</mosaic_0001>

<llo_original>
// kernel: logic_coord_loss.1
$region0: #{logic_coord_loss.1}
  #allocation0 [shape = 'u32[]', space=smem, size = 0x4, offset = 0x4, fixed_abs, tag = 'smem constant byte address 0x4 - core index']
  #allocation1 [shape = 'u32[144,128]{1,0:T(1,128)}', space=vmem, size = 0x12000, scoped, tag = 'internal scratch']
  %s0 = inlined_call_operand.vmem [shape: f32[8,512], index: 0, kind: input, shape index: {}]
  %s1 = inlined_call_operand.vmem [shape: f32[8,512], index: 1, kind: input, shape index: {}]
  %s2 = inlined_call_operand.vmem [shape: f32[8,512], index: 2, kind: input, shape index: {}]
  %s3 = inlined_call_operand.vmem [shape: f32[1,8,512], index: 3, kind: output, shape index: {0}]
  %s4 = inlined_call_operand.vmem [shape: f32[1,8,512], index: 4, kind: output, shape index: {1}]
  %5 = xla_tuple %s3, %s4
  %s6 = sld [smem:[#allocation0]]
  $region34: #{logic_coord_loss.1} parent=0
    _
  %s8 = ssub.s32 1, %s6
  %s9 = scalar_select 0, %s8, %s6
  // Predicated region
  $region2: #{logic_coord_loss.1} parent=0 // pred_check
    _
  $region3: #{logic_coord_loss.1} parent=0 // pred_check_branch
    %11 = sbr.rel (0) target = $region5
  $region4: #{logic_coord_loss.1} parent=0 // pred_region
    %s12 = sadd.s32 0, 0
    %p13 = scmp.lt.s32.totalorder %s12, 0
    %s14 = scalar_select %p13, %s12, 0
    %s15 = smul.addr %s14, 4
    %s16 = smul.addr %s15, 8
    %s17 = scalar_lea.vmem %s0, %s16
    %s18 = sadd.s32 0, 0
  $region5: #{logic_coord_loss.1} parent=0 // pred_fallthru
    _
  // Predicated region
  $region6: #{logic_coord_loss.1} parent=0 // pred_check
    _
  $region7: #{logic_coord_loss.1} parent=0 // pred_check_branch
    %20 = sbr.rel (0) target = $region9
  $region8: #{logic_coord_loss.1} parent=0 // pred_region
    %s21 = sadd.s32 0, 0
    %p22 = scmp.lt.s32.totalorder %s21, 0
    %s23 = scalar_select %p22, %s21, 0
    %s24 = smul.addr %s23, 4
    %s25 = smul.addr %s24, 8
    %s26 = scalar_lea.vmem %s1, %s25
    %s27 = sadd.s32 0, 0
  $region9: #{logic_coord_loss.1} parent=0 // pred_fallthru
    _
  // Predicated region
  $region10: #{logic_coord_loss.1} parent=0 // pred_check
    _
  $region11: #{logic_coord_loss.1} parent=0 // pred_check_branch
    %29 = sbr.rel (0) target = $region13
  $region12: #{logic_coord_loss.1} parent=0 // pred_region
    %s30 = sadd.s32 0, 0
    %p31 = scmp.lt.s32.totalorder %s30, 0
    %s32 = scalar_select %p31, %s30, 0
    %s33 = smul.addr %s32, 4
    %s34 = smul.addr %s33, 8
    %s35 = scalar_lea.vmem %s2, %s34
    %s36 = sadd.s32 0, 0
  $region13: #{logic_coord_loss.1} parent=0 // pred_fallthru
    _
  %s37 = sadd.s32 0, 0
  %p38 = scmp.lt.s32.totalorder %s37, 0
  %s39 = scalar_select %p38, %s37, 0
  %s40 = smul.addr %s39, 4
  %s41 = smul.addr %s40, 8
  %s42 = scalar_lea.vmem %s0, %s41
  %s43 = sadd.s32 0, 0
  %p44 = scmp.lt.s32.totalorder %s43, 0
  %s45 = scalar_select %p44, %s43, 0
  %s46 = smul.addr %s45, 4
  %s47 = smul.addr %s46, 8
  %s48 = scalar_lea.vmem %s1, %s47
  %s49 = sadd.s32 0, 0
  %p50 = scmp.lt.s32.totalorder %s49, 0
  %s51 = scalar_select %p50, %s49, 0
  %s52 = smul.addr %s51, 4
  %s53 = smul.addr %s52, 8
  %s54 = scalar_lea.vmem %s2, %s53
  %s55 = sadd.s32 0, 0
  %p56 = scmp.lt.s32.totalorder %s55, 0
  %s57 = scalar_select %p56, %s55, 0
  %s58 = smul.addr %s57, 4
  %s59 = smul.addr %s58, 8
  %s60 = scalar_lea.vmem %s0, %s59
  %s61 = sadd.s32 0, 0
  %s62 = sadd.s32 0, 0
  %p63 = scmp.lt.s32.totalorder %s62, 0
  %s64 = scalar_select %p63, %s62, 0
  %s65 = smul.addr %s64, 4
  %s66 = smul.addr %s65, 8
  %s67 = scalar_lea.vmem %s1, %s66
  %s68 = sadd.s32 0, 0
  %s69 = sadd.s32 0, 0
  %p70 = scmp.lt.s32.totalorder %s69, 0
  %s71 = scalar_select %p70, %s69, 0
  %s72 = smul.addr %s71, 4
  %s73 = smul.addr %s72, 8
  %s74 = scalar_lea.vmem %s2, %s73
  %s75 = sadd.s32 0, 0
  %p76 = scmp.eq.s32.totalorder 0, 0
  // Predicated region
  $region14: #{logic_coord_loss.1} parent=0 // pred_check
    %p77 = pneg %p76
  $region15: #{logic_coord_loss.1} parent=0 // pred_check_branch
    %79 = sbr.rel (%p77) target = $region17
  $region16: #{logic_coord_loss.1} parent=0 // pred_region
    %80 = vst [vmem:[%s3] sm:$0xff] 0.0
    %81 = vst [vmem:[%s3 + $0x8] sm:$0xff] 0.0
    %82 = vst [vmem:[%s3 + $0x10] sm:$0xff] 0.0
    %83 = vst [vmem:[%s3 + $0x18] sm:$0xff] 0.0
    %84 = vst [vmem:[%s4] sm:$0xff] 0.0
    %85 = vst [vmem:[%s4 + $0x8] sm:$0xff] 0.0
    %86 = vst [vmem:[%s4 + $0x10] sm:$0xff] 0.0
    %87 = vst [vmem:[%s4 + $0x18] sm:$0xff] 0.0
  $region17: #{logic_coord_loss.1} parent=0 // pred_fallthru
    _
  %v88 = vld [vmem:[%s60] sm:$0xff]
  %v89 = vld [vmem:[%s60 + $0x8] sm:$0xff]
  %v90 = vld [vmem:[%s60 + $0x10] sm:$0xff]
  %v91 = vld [vmem:[%s60 + $0x18] sm:$0xff]
  %v92 = vld [vmem:[%s67] sm:$0xff]
  %v93 = vld [vmem:[%s67 + $0x8] sm:$0xff]
  %v94 = vld [vmem:[%s67 + $0x10] sm:$0xff]
  %v95 = vld [vmem:[%s67 + $0x18] sm:$0xff]
  %v96 = vld [vmem:[%s74] sm:$0xff]
  %v97 = vld [vmem:[%s74 + $0x8] sm:$0xff]
  %v98 = vld [vmem:[%s74 + $0x10] sm:$0xff]
  %v99 = vld [vmem:[%s74 + $0x18] sm:$0xff]
  %v100 = vround.ne.pseudo %v92
  %v101 = vround.ne.pseudo %v93
  %v102 = vround.ne.pseudo %v94
  %v103 = vround.ne.pseudo %v95
  %v104 = vsub.f32 %v92, %v100
  %v105 = vsub.f32 %v93, %v101
  %v106 = vsub.f32 %v94, %v102
  %v107 = vsub.f32 %v95, %v103
  %v108 = vand.u32 2147483647, %v104
  %v109 = vand.u32 2147483647, %v105
  %v110 = vand.u32 2147483647, %v106
  %v111 = vand.u32 2147483647, %v107
  %v112 = vsub.f32 1.0, %v108
  %v113 = vsub.f32 1.0, %v109
  %v114 = vsub.f32 1.0, %v110
  %v115 = vsub.f32 1.0, %v111
  %v116 = vmul.f32 %v112, %v112
  %v117 = vmul.f32 %v113, %v113
  %v118 = vmul.f32 %v114, %v114
  %v119 = vmul.f32 %v115, %v115
  %v120 = vmul.f32 %v96, %v116
  %v121 = vmul.f32 %v97, %v117
  %v122 = vmul.f32 %v98, %v118
  %v123 = vmul.f32 %v99, %v119
  %v124 = vsub.f32 %v88, %v92
  %v125 = vsub.f32 %v89, %v93
  %v126 = vsub.f32 %v90, %v94
  %v127 = vsub.f32 %v91, %v95
  %v128 = vand.u32 2147483647, %v124
  %v129 = vand.u32 2147483647, %v125
  %v130 = vand.u32 2147483647, %v126
  %v131 = vand.u32 2147483647, %v127
  %v132 = vmul.f32 %v120, %v128
  %v133 = vmul.f32 %v121, %v129
  %v134 = vmul.f32 %v122, %v130
  %v135 = vmul.f32 %v123, %v131
  %v136 = vld [vmem:[%s3] sm:$0xff]
  %v137 = vld [vmem:[%s3 + $0x8] sm:$0xff]
  %v138 = vld [vmem:[%s3 + $0x10] sm:$0xff]
  %v139 = vld [vmem:[%s3 + $0x18] sm:$0xff]
  %v140 = vadd.f32 %v132, 0.0
  %v141 = vadd.f32 %v133, 0.0
  %v142 = vadd.f32 %v134, 0.0
  %v143 = vadd.f32 %v135, 0.0
  %v144 = vadd.f32 %v136, %v140
  %v145 = vadd.f32 %v137, %v141
  %v146 = vadd.f32 %v138, %v142
  %v147 = vadd.f32 %v139, %v143
  %148 = vst [vmem:[%s3] sm:$0xff] %v144
  %149 = vst [vmem:[%s3 + $0x8] sm:$0xff] %v145
  %150 = vst [vmem:[%s3 + $0x10] sm:$0xff] %v146
  %151 = vst [vmem:[%s3 + $0x18] sm:$0xff] %v147
  %v152 = vld [vmem:[%s4] sm:$0xff]
  %v153 = vld [vmem:[%s4 + $0x8] sm:$0xff]
  %v154 = vld [vmem:[%s4 + $0x10] sm:$0xff]
  %v155 = vld [vmem:[%s4 + $0x18] sm:$0xff]
  %v156 = vadd.f32 %v96, 0.0
  %v157 = vadd.f32 %v97, 0.0
  %v158 = vadd.f32 %v98, 0.0
  %v159 = vadd.f32 %v99, 0.0
  %v160 = vadd.f32 %v152, %v156
  %v161 = vadd.f32 %v153, %v157
  %v162 = vadd.f32 %v154, %v158
  %v163 = vadd.f32 %v155, %v159
  %164 = vst [vmem:[%s4] sm:$0xff] %v160
  %165 = vst [vmem:[%s4 + $0x8] sm:$0xff] %v161
  %166 = vst [vmem:[%s4 + $0x10] sm:$0xff] %v162
  %167 = vst [vmem:[%s4 + $0x18] sm:$0xff] %v163
  // Predicated region
  $region18: #{logic_coord_loss.1} parent=0 // pred_check
    _
  $region19: #{logic_coord_loss.1} parent=0 // pred_check_branch
    %169 = sbr.rel (0) target = $region21
  $region20: #{logic_coord_loss.1} parent=0 // pred_region
    _
  $region21: #{logic_coord_loss.1} parent=0 // pred_fallthru
    _
  // Predicated region
  $region22: #{logic_coord_loss.1} parent=0 // pred_check
    _
  $region23: #{logic_coord_loss.1} parent=0 // pred_check_branch
    %171 = sbr.rel (0) target = $region25
  $region24: #{logic_coord_loss.1} parent=0 // pred_region
    _
  $region25: #{logic_coord_loss.1} parent=0 // pred_fallthru
    _
  // Predicated region
  $region26: #{logic_coord_loss.1} parent=0 // pred_check
    _
  $region27: #{logic_coord_loss.1} parent=0 // pred_check_branch
    %173 = sbr.rel (0) target = $region29
  $region28: #{logic_coord_loss.1} parent=0 // pred_region
    _
  $region29: #{logic_coord_loss.1} parent=0 // pred_fallthru
    _
  // Predicated region
  $region30: #{logic_coord_loss.1} parent=0 // pred_check
    _
  $region31: #{logic_coord_loss.1} parent=0 // pred_check_branch
    %175 = sbr.rel (0) target = $region33
  $region32: #{logic_coord_loss.1} parent=0 // pred_region
    _
  $region33: #{logic_coord_loss.1} parent=0 // pred_fallthru
    _

</llo_original>
